<compile_context>
chip_gen: v7x
topology: tpu7x:2x2x1
jax: 0.10.0
libtpu: 0.0.40
codegen_flags: <defaults>
</compile_context>

<pallas_src>
import jax
import jax.numpy as jnp
from jax.experimental import pallas as pl
from jax.experimental.pallas import tpu as pltpu


def _sage_body_kernel(a_ref, x_ref, w1_ref, b1_ref, w2_ref, b2_ref, o_ref):
    """Fused 2-layer SAGEConv('mean') forward: agg + combined matmul per layer."""
    a = a_ref[...]                                   # (N, N) bf16 (0/1 exact)
    x = x_ref[...]                                   # (N, F) bf16

    # --- in-degree normalization, computed once, reused by both layers (f32) ---
    deg = jnp.sum(a.astype(jnp.float32), axis=-1, keepdims=True)      # (N, 1)
    inv_deg = pl.reciprocal(jnp.maximum(deg, 1.0), approx=True)       # (N, 1) EUP
    # (A @ h) is already 0 for zero-in-degree rows, so no select is needed.

    # --------------------------- layer 1 (+ ReLU) ---------------------------
    h_sum = jnp.dot(a, x, preferred_element_type=jnp.float32)         # (N, F)
    h_neigh = h_sum * inv_deg                                          # (N, F) f32
    x_cat = jnp.concatenate([x, h_neigh.astype(x.dtype)], axis=-1)     # (N, 2F) bf16
    h1 = (jnp.dot(x_cat, w1_ref[...], preferred_element_type=jnp.float32)
          + b1_ref[...])                                               # (N, H) f32
    h1 = jnp.maximum(h1, 0.0)                                          # ReLU
    # TODO(synk): dropout is identity (inference mode); training would use
    # pltpu.prng_seed + pltpu.stateful_bernoulli here.

    # ------------------------------ layer 2 ---------------------------------
    h1_bf = h1.astype(a.dtype)                                         # (N, H) bf16
    h2_sum = jnp.dot(a, h1_bf, preferred_element_type=jnp.float32)     # (N, H)
    h2_neigh = (h2_sum * inv_deg).astype(a.dtype)                      # (N, H) bf16
    h_cat = jnp.concatenate([h1_bf, h2_neigh], axis=-1)                # (N, 2H) bf16
    out = (jnp.dot(h_cat, w2_ref[...], preferred_element_type=jnp.float32)
           + b2_ref[...])                                              # (N, H) f32

    o_ref[...] = out.astype(o_ref.dtype)


def sage_body_forward(params, a, x):
    """x = relu(gc1(g, x)); x = dropout(x); x = gc2(g, x)  — one pallas_call."""
    N, _ = x.shape
    H = params["gc1"]["w_self"].shape[1]

    # Precompute stacked weights wrapper-side so the only in-kernel concat is
    # on [x | h_neigh].  Matmul operands in bf16 (A is 0/1 -> exact in bf16).
    w1 = jnp.concatenate(
        [params["gc1"]["w_self"], params["gc1"]["w_neigh"]], axis=0
    ).astype(jnp.bfloat16)                                             # (2F, H)
    w2 = jnp.concatenate(
        [params["gc2"]["w_self"], params["gc2"]["w_neigh"]], axis=0
    ).astype(jnp.bfloat16)                                             # (2H, H)
    b1 = params["gc1"]["bias"]                                         # (1, H) f32
    b2 = params["gc2"]["bias"]                                         # (1, H) f32

    a_bf = a.astype(jnp.bfloat16)
    x_bf = x.astype(jnp.bfloat16)

    # TODO(synk): for large N, dense A is O(N^2) and must be tiled over a grid
    # sized from pltpu.get_tpu_info().vmem_capacity_bytes; whole-array VMEM
    # specs are the right choice only at this small scale.
    vmem = pl.BlockSpec(memory_space=pltpu.MemorySpace.VMEM)
    return pl.pallas_call(
        _sage_body_kernel,
        out_shape=jax.ShapeDtypeStruct((N, H), jnp.float32),
        in_specs=[vmem] * 6,
        out_specs=vmem,
    )(a_bf, x_bf, w1, b1, w2, b2)


def init_sage_body_params(key, nfeat, nhid):
    """Deterministic Xavier-uniform weights, zero biases (like DGL SAGEConv)."""
    def xavier(k, fan_in, fan_out):
        lim = (6.0 / (fan_in + fan_out)) ** 0.5
        return jax.random.uniform(k, (fan_in, fan_out), jnp.float32, -lim, lim)

    k1, k2, k3, k4 = jax.random.split(key, 4)
    return {
        "gc1": {
            "w_self": xavier(k1, nfeat, nhid),
            "w_neigh": xavier(k2, nfeat, nhid),
            "bias": jnp.zeros((1, nhid), jnp.float32),
        },
        "gc2": {
            "w_self": xavier(k3, nhid, nhid),
            "w_neigh": xavier(k4, nhid, nhid),
            "bias": jnp.zeros((1, nhid), jnp.float32),
        },
    }


if __name__ == "__main__":
    key = jax.random.PRNGKey(0)
    k_param, k_adj, k_feat = jax.random.split(key, 3)

    N, nfeat, nhid = 16, 8, 32   # 16 nodes, 8 input feats, 32 hidden

    params = init_sage_body_params(k_param, nfeat, nhid)

    # Deterministic random graph (dense adjacency, ~30% edge density) + features.
    adj = (jax.random.uniform(k_adj, (N, N)) < 0.3).astype(jnp.float32)
    x = jax.random.normal(k_feat, (N, nfeat), jnp.float32)

    out = sage_body_forward(params, adj, x)
    out = jax.block_until_ready(out)

    assert out.shape == (N, nhid), out.shape
    assert out.dtype == jnp.float32
    assert bool(jnp.all(jnp.isfinite(out)))

    print("KERNEL_OK")
</pallas_src>

<mosaic_0001>
module attributes {stable_mosaic.version = 11 : i64} {
  func.func @_sage_body_kernel(%arg0: memref<16x16xbf16, #tpu.memory_space<vmem>>, %arg1: memref<16x8xbf16, #tpu.memory_space<vmem>>, %arg2: memref<16x32xbf16, #tpu.memory_space<vmem>>, %arg3: memref<1x32xf32, #tpu.memory_space<vmem>>, %arg4: memref<64x32xbf16, #tpu.memory_space<vmem>>, %arg5: memref<1x32xf32, #tpu.memory_space<vmem>>, %arg6: memref<16x32xf32, #tpu.memory_space<vmem>>) attributes {dimension_semantics = [], scalar_prefetch = 0 : i64, scratch_operands = 0 : i64, tpu.core_type = #tpu.core_type<tc>} {
    %c0 = arith.constant 0 : index
    %c0_0 = arith.constant 0 : index
    %0 = vector.load %arg0[%c0, %c0_0] : memref<16x16xbf16, #tpu.memory_space<vmem>>, vector<16x16xbf16>
    %c0_1 = arith.constant 0 : index
    %c0_2 = arith.constant 0 : index
    %1 = vector.load %arg1[%c0_1, %c0_2] : memref<16x8xbf16, #tpu.memory_space<vmem>>, vector<16x8xbf16>
    %2 = arith.extf %0 : vector<16x16xbf16> to vector<16x16xf32>
    %cst = arith.constant dense<0.000000e+00> : vector<16xf32>
    %3 = vector.multi_reduction <add>, %2, %cst [1] : vector<16x16xf32> to vector<16xf32>
    %4 = vector.shape_cast %3 : vector<16xf32> to vector<16x1xf32>
    %cst_3 = arith.constant 1.000000e+00 : f32
    %5 = vector.broadcast %cst_3 : f32 to vector<16x1xf32>
    %6 = arith.maximumf %4, %5 : vector<16x1xf32>
    %7 = tpu.reciprocal %6 {approx = true} : vector<16x1xf32> -> vector<16x1xf32>
    %cst_4 = arith.constant dense<0.000000e+00> : vector<16x8xf32>
    %8 = tpu.matmul %0, %1, %cst_4 {dimension_numbers = #tpu.dot_dimension_numbers<[1], [0], [0], [1], [0, 0, 1, 1], [], []>} : vector<16x16xbf16>, vector<16x8xbf16>, vector<16x8xf32> -> vector<16x8xf32>
    %9 = vector.broadcast %7 : vector<16x1xf32> to vector<16x8xf32>
    %10 = arith.mulf %8, %9 : vector<16x8xf32>
    %11 = arith.truncf %10 : vector<16x8xf32> to vector<16x8xbf16>
    %12 = tpu.concatenate %1, %11 in 1 : vector<16x8xbf16>, vector<16x8xbf16> -> vector<16x16xbf16>
    %c0_5 = arith.constant 0 : index
    %c0_6 = arith.constant 0 : index
    %13 = vector.load %arg2[%c0_5, %c0_6] : memref<16x32xbf16, #tpu.memory_space<vmem>>, vector<16x32xbf16>
    %cst_7 = arith.constant dense<0.000000e+00> : vector<16x32xf32>
    %14 = tpu.matmul %12, %13, %cst_7 {dimension_numbers = #tpu.dot_dimension_numbers<[1], [0], [0], [1], [0, 0, 1, 1], [], []>} : vector<16x16xbf16>, vector<16x32xbf16>, vector<16x32xf32> -> vector<16x32xf32>
    %c0_8 = arith.constant 0 : index
    %c0_9 = arith.constant 0 : index
    %15 = vector.load %arg3[%c0_8, %c0_9] : memref<1x32xf32, #tpu.memory_space<vmem>>, vector<1x32xf32>
    %16 = vector.broadcast %15 : vector<1x32xf32> to vector<16x32xf32>
    %17 = arith.addf %14, %16 : vector<16x32xf32>
    %cst_10 = arith.constant 0.000000e+00 : f32
    %18 = vector.broadcast %cst_10 : f32 to vector<16x32xf32>
    %19 = arith.maximumf %17, %18 : vector<16x32xf32>
    %20 = arith.truncf %19 : vector<16x32xf32> to vector<16x32xbf16>
    %cst_11 = arith.constant dense<0.000000e+00> : vector<16x32xf32>
    %21 = tpu.matmul %0, %20, %cst_11 {dimension_numbers = #tpu.dot_dimension_numbers<[1], [0], [0], [1], [0, 0, 1, 1], [], []>} : vector<16x16xbf16>, vector<16x32xbf16>, vector<16x32xf32> -> vector<16x32xf32>
    %22 = vector.broadcast %7 : vector<16x1xf32> to vector<16x32xf32>
    %23 = arith.mulf %21, %22 : vector<16x32xf32>
    %24 = arith.truncf %23 : vector<16x32xf32> to vector<16x32xbf16>
    %25 = tpu.concatenate %20, %24 in 1 : vector<16x32xbf16>, vector<16x32xbf16> -> vector<16x64xbf16>
    %c0_12 = arith.constant 0 : index
    %c0_13 = arith.constant 0 : index
    %26 = vector.load %arg4[%c0_12, %c0_13] : memref<64x32xbf16, #tpu.memory_space<vmem>>, vector<64x32xbf16>
    %cst_14 = arith.constant dense<0.000000e+00> : vector<16x32xf32>
    %27 = tpu.matmul %25, %26, %cst_14 {dimension_numbers = #tpu.dot_dimension_numbers<[1], [0], [0], [1], [0, 0, 1, 1], [], []>} : vector<16x64xbf16>, vector<64x32xbf16>, vector<16x32xf32> -> vector<16x32xf32>
    %c0_15 = arith.constant 0 : index
    %c0_16 = arith.constant 0 : index
    %28 = vector.load %arg5[%c0_15, %c0_16] : memref<1x32xf32, #tpu.memory_space<vmem>>, vector<1x32xf32>
    %29 = vector.broadcast %28 : vector<1x32xf32> to vector<16x32xf32>
    %30 = arith.addf %27, %29 : vector<16x32xf32>
    %c0_17 = arith.constant 0 : index
    %c0_18 = arith.constant 0 : index
    %31 = vector.load %arg6[%c0_17, %c0_18] : memref<16x32xf32, #tpu.memory_space<vmem>>, vector<16x32xf32>
    tpu.vector_store %arg6[%c0_17, %c0_18], %30 {strides = array<i32>} : memref<16x32xf32, #tpu.memory_space<vmem>>, vector<16x32xf32>,
    return
  }
}

</mosaic_0001>

<llo_original>
// kernel: tpu_custom_call.1
$region0: #{tpu_custom_call.1}
  #allocation0 [shape = 'u32[]', space=smem, size = 0x4, offset = 0x4, fixed_abs, tag = 'smem constant byte address 0x4 - core index']
  #allocation1 [shape = 'u32[144,128]{1,0:T(1,128)}', space=vmem, size = 0x12000, scoped, tag = 'internal scratch']
  %s0 = inlined_call_operand.vmem [shape: bf16[16,16], index: 0, kind: input, shape index: {}]
  %s1 = inlined_call_operand.vmem [shape: bf16[16,8], index: 1, kind: input, shape index: {}]
  %s2 = inlined_call_operand.vmem [shape: bf16[16,32], index: 2, kind: input, shape index: {}]
  %s3 = inlined_call_operand.vmem [shape: f32[1,32], index: 3, kind: input, shape index: {}]
  %s4 = inlined_call_operand.vmem [shape: bf16[64,32], index: 4, kind: input, shape index: {}]
  %s5 = inlined_call_operand.vmem [shape: f32[1,32], index: 5, kind: input, shape index: {}]
  %s6 = inlined_call_operand.hbm [shape: f32[16,32], index: 6, kind: output, shape index: {}]
  %s7 = sld [smem:[#allocation0]]
  $region34: #{tpu_custom_call.1} parent=0
    _
  %s9 = ssub.s32 1, %s7
  %s10 = scalar_select 0, %s9, %s7
  $region1: #{tpu_custom_call.1} parent=0
    #allocation2 [shape = 'u8[8192]{0}', space=vmem, size = 0x2000, scoped, tag = 'output window, operand 0, single buffered']
    #allocation3 [shape = 's32[1]{0}', space=sflag, size = 0x4, scoped, tag = 'scoped memory for tpu_custom_call.1']
    %11 = vsyncpa [#allocation3], 0
    // Predicated region
    $region2: #{tpu_custom_call.1} parent=1 // pred_check
      _
    $region3: #{tpu_custom_call.1} parent=1 // pred_check_branch
      %13 = sbr.rel (0) target = $region5
    $region4: #{tpu_custom_call.1} parent=1 // pred_region
      _
    $region5: #{tpu_custom_call.1} parent=1 // pred_fallthru
      _
    // Predicated region
    $region6: #{tpu_custom_call.1} parent=1 // pred_check
      _
    $region7: #{tpu_custom_call.1} parent=1 // pred_check_branch
      %15 = sbr.rel (0) target = $region9
    $region8: #{tpu_custom_call.1} parent=1 // pred_region
      _
    $region9: #{tpu_custom_call.1} parent=1 // pred_fallthru
      _
    // Predicated region
    $region10: #{tpu_custom_call.1} parent=1 // pred_check
      _
    $region11: #{tpu_custom_call.1} parent=1 // pred_check_branch
      %17 = sbr.rel (0) target = $region13
    $region12: #{tpu_custom_call.1} parent=1 // pred_region
      _
    $region13: #{tpu_custom_call.1} parent=1 // pred_fallthru
      _
    // Predicated region
    $region14: #{tpu_custom_call.1} parent=1 // pred_check
      _
    $region15: #{tpu_custom_call.1} parent=1 // pred_check_branch
      %19 = sbr.rel (0) target = $region17
    $region16: #{tpu_custom_call.1} parent=1 // pred_region
      _
    $region17: #{tpu_custom_call.1} parent=1 // pred_fallthru
      _
    // Predicated region
    $region18: #{tpu_custom_call.1} parent=1 // pred_check
      _
    $region19: #{tpu_custom_call.1} parent=1 // pred_check_branch
      %21 = sbr.rel (0) target = $region21
    $region20: #{tpu_custom_call.1} parent=1 // pred_region
      _
    $region21: #{tpu_custom_call.1} parent=1 // pred_fallthru
      _
    // Predicated region
    $region22: #{tpu_custom_call.1} parent=1 // pred_check
      _
    $region23: #{tpu_custom_call.1} parent=1 // pred_check_branch
      %23 = sbr.rel (0) target = $region25
    $region24: #{tpu_custom_call.1} parent=1 // pred_region
      _
    $region25: #{tpu_custom_call.1} parent=1 // pred_fallthru
      _
    %v25 = vld [vmem:[%s0] sm:$0xf]
    %v26 = vld [vmem:[%s0 + $0x4] sm:$0xf]
    %v27 = vld [vmem:[%s1] sm:$0xf]
    %v28 = vld [vmem:[%s1 + $0x4] sm:$0xf]
    %v29 = vunpack.c.l.bf16 %v25
    %v30 = vunpack.c.l.bf16 %v26
    %vm31 = vcmask 130048
    %v32 = vsel %vm31, %v29, 0.0
    %33 = vadd.xlane.f32.xlu0 %v32
    %v34 = vpop.xlane.xlu0 %33
    %v35 = vsel %vm31, %v30, 0.0
    %36 = vadd.xlane.f32.xlu0 %v35
    %v37 = vpop.xlane.xlu0 %36
    %v38 = vmax.f32 %v34, 1.0
    %v39 = vmax.f32 %v37, 1.0
    %v40 = vrcp.pop %v38
    %v41 = vrcp.pop %v39
    %v44 = vunpack.c.l.b16 %v25
    %v45 = vunpack.c.l.b16 %v26
    %v46 = vpack.c.b16 %v45, %v44
    %v49 = vunpack.c.l.b16 %v27
    %v50 = vunpack.c.l.b16 %v28
    %v51 = vpack.c.b16 %v50, %v49
    %v54 = vsel %vm31, %v46, 0
    %56 = vmatprep.subr.bf16.mxu0 0
    %57 = vmatpush1.bf16.msra.mxu0 %v51
    %58 = vmatprep.subr.bf16.mxu0 0
    %59 = vmatpush1.bf16.msra.mxu0 0
    %60 = vmatprep.subr.bf16.mxu0 0
    %61 = vmatpush1.bf16.msra.mxu0 0
    %62 = vmatprep.subr.bf16.mxu0 0
    %63 = vmatpush1.bf16.msra.mxu0 0
    %64 = vmatprep.subr.bf16.mxu0 0
    %65 = vmatpush1.bf16.msra.mxu0 0
    %66 = vmatprep.subr.bf16.mxu0 0
    %67 = vmatpush1.bf16.msra.mxu0 0
    %68 = vmatprep.subr.bf16.mxu0 0
    %69 = vmatpush1.bf16.msra.mxu0 0
    %70 = vmatprep.subr.bf16.mxu0 0
    %71 = vmatpush1.bf16.msra.mxu0 0
    %72 = vmatprep.subr.bf16.mxu0 0
    %73 = vmatpush1.bf16.msra.mxu0 0
    %74 = vmatprep.subr.bf16.mxu0 0
    %75 = vmatpush1.bf16.msra.mxu0 0
    %76 = vmatprep.subr.bf16.mxu0 0
    %77 = vmatpush1.bf16.msra.mxu0 0
    %78 = vmatprep.subr.bf16.mxu0 0
    %79 = vmatpush1.bf16.msra.mxu0 0
    %80 = vmatprep.subr.bf16.mxu0 0
    %81 = vmatpush1.bf16.msra.mxu0 0
    %82 = vmatprep.subr.bf16.mxu0 0
    %83 = vmatpush1.bf16.msra.mxu0 0
    %84 = vmatprep.subr.bf16.mxu0 0
    %85 = vmatpush1.bf16.msra.mxu0 0
    %86 = vmatprep.subr.bf16.mxu0 0
    %87 = vmatpush1.bf16.msra.mxu0 0
    %88 = vmatprep.mubr.bf16.mxu0 0
    %89 = vmatmul.mubr.bf16.gmra.mrb[0].mxu0 %v54
    %v90 = vpop.f32.mrb[0].mxu0
    %v91 = vadd.f32 0.0, %v90
    %v92 = vpop.f32.mrb[0].mxu0
    %v93 = vpop.f32.mrb[0].mxu0
    %v94 = vadd.f32 0.0, %v93
    %v95 = vpop.f32.mrb[0].mxu0
    %96 = vdwg.mxu0
    %v97 = vmul.f32 %v91, %v40
    %v98 = vmul.f32 %v94, %v41
    %v99 = vpack.c.bf16 %v98, %v97
    %101 = vrot.lane.b32.xlu0 %v99, 8
    %v102 = vpop.permute.xlu0 %101
    %vm103 = vcmask 64512
    %v106 = vsel %vm103, %v51, %v102
    %v107 = vld [vmem:[%s2] sm:$0xf]
    %v108 = vld [vmem:[%s2 + $0x4] sm:$0xf]
    %v109 = vld [vmem:[%s3] sm:$0x1]
    %v111 = vlaneseq
    %v112 = vshrl.u32 %v111, 7
    %v113 = vsub.s32 0, %v112
    %v114 = vrot.slane %v109, %v113
    %v118 = vunpack.c.l.b16 %v107
    %v119 = vunpack.c.l.b16 %v108
    %v120 = vpack.c.b16 %v119, %v118
    %v122 = vsel %vm31, %v106, 0
    %124 = vmatprep.subr.bf16.mxu0 0
    %125 = vmatpush1.bf16.msra.mxu0 %v120
    %126 = vmatprep.subr.bf16.mxu0 0
    %127 = vmatpush1.bf16.msra.mxu0 0
    %128 = vmatprep.subr.bf16.mxu0 0
    %129 = vmatpush1.bf16.msra.mxu0 0
    %130 = vmatprep.subr.bf16.mxu0 0
    %131 = vmatpush1.bf16.msra.mxu0 0
    %132 = vmatprep.subr.bf16.mxu0 0
    %133 = vmatpush1.bf16.msra.mxu0 0
    %134 = vmatprep.subr.bf16.mxu0 0
    %135 = vmatpush1.bf16.msra.mxu0 0
    %136 = vmatprep.subr.bf16.mxu0 0
    %137 = vmatpush1.bf16.msra.mxu0 0
    %138 = vmatprep.subr.bf16.mxu0 0
    %139 = vmatpush1.bf16.msra.mxu0 0
    %140 = vmatprep.subr.bf16.mxu0 0
    %141 = vmatpush1.bf16.msra.mxu0 0
    %142 = vmatprep.subr.bf16.mxu0 0
    %143 = vmatpush1.bf16.msra.mxu0 0
    %144 = vmatprep.subr.bf16.mxu0 0
    %145 = vmatpush1.bf16.msra.mxu0 0
    %146 = vmatprep.subr.bf16.mxu0 0
    %147 = vmatpush1.bf16.msra.mxu0 0
    %148 = vmatprep.subr.bf16.mxu0 0
    %149 = vmatpush1.bf16.msra.mxu0 0
    %150 = vmatprep.subr.bf16.mxu0 0
    %151 = vmatpush1.bf16.msra.mxu0 0
    %152 = vmatprep.subr.bf16.mxu0 0
    %153 = vmatpush1.bf16.msra.mxu0 0
    %154 = vmatprep.subr.bf16.mxu0 0
    %155 = vmatpush1.bf16.msra.mxu0 0
    %156 = vmatprep.mubr.bf16.mxu0 0
    %157 = vmatmul.mubr.bf16.gmra.mrb[0].mxu0 %v122
    %v158 = vpop.f32.mrb[0].mxu0
    %v159 = vadd.f32 %v114, %v158
    %v160 = vpop.f32.mrb[0].mxu0
    %v161 = vpop.f32.mrb[0].mxu0
    %v162 = vadd.f32 %v114, %v161
    %v163 = vpop.f32.mrb[0].mxu0
    %164 = vdwg.mxu0
    %v165 = vmax.f32 %v159, 0.0
    %v166 = vmax.f32 %v162, 0.0
    %v167 = vpack.c.bf16 %v166, %v165
    %168 = vmatprep.subr.bf16.mxu0 0
    %169 = vmatpush1.bf16.msra.mxu0 %v167
    %170 = vmatprep.subr.bf16.mxu0 0
    %171 = vmatpush1.bf16.msra.mxu0 0
    %172 = vmatprep.subr.bf16.mxu0 0
    %173 = vmatpush1.bf16.msra.mxu0 0
    %174 = vmatprep.subr.bf16.mxu0 0
    %175 = vmatpush1.bf16.msra.mxu0 0
    %176 = vmatprep.subr.bf16.mxu0 0
    %177 = vmatpush1.bf16.msra.mxu0 0
    %178 = vmatprep.subr.bf16.mxu0 0
    %179 = vmatpush1.bf16.msra.mxu0 0
    %180 = vmatprep.subr.bf16.mxu0 0
    %181 = vmatpush1.bf16.msra.mxu0 0
    %182 = vmatprep.subr.bf16.mxu0 0
    %183 = vmatpush1.bf16.msra.mxu0 0
    %184 = vmatprep.subr.bf16.mxu0 0
    %185 = vmatpush1.bf16.msra.mxu0 0
    %186 = vmatprep.subr.bf16.mxu0 0
    %187 = vmatpush1.bf16.msra.mxu0 0
    %188 = vmatprep.subr.bf16.mxu0 0
    %189 = vmatpush1.bf16.msra.mxu0 0
    %190 = vmatprep.subr.bf16.mxu0 0
    %191 = vmatpush1.bf16.msra.mxu0 0
    %192 = vmatprep.subr.bf16.mxu0 0
    %193 = vmatpush1.bf16.msra.mxu0 0
    %194 = vmatprep.subr.bf16.mxu0 0
    %195 = vmatpush1.bf16.msra.mxu0 0
    %196 = vmatprep.subr.bf16.mxu0 0
    %197 = vmatpush1.bf16.msra.mxu0 0
    %198 = vmatprep.subr.bf16.mxu0 0
    %199 = vmatpush1.bf16.msra.mxu0 0
    %200 = vmatprep.mubr.bf16.mxu0 0
    %201 = vmatmul.mubr.bf16.gmra.mrb[0].mxu0 %v54
    %v202 = vpop.f32.mrb[0].mxu0
    %v203 = vadd.f32 0.0, %v202
    %v204 = vpop.f32.mrb[0].mxu0
    %v205 = vpop.f32.mrb[0].mxu0
    %v206 = vadd.f32 0.0, %v205
    %v207 = vpop.f32.mrb[0].mxu0
    %208 = vdwg.mxu0
    %v209 = vmul.f32 %v203, %v40
    %v210 = vmul.f32 %v206, %v41
    %v211 = vpack.c.bf16 %v210, %v209
    %213 = vrot.lane.b32.xlu0 %v211, 32
    %v214 = vpop.permute.xlu0 %213
    %vm215 = vcmask 261120
    %v218 = vsel %vm215, %v167, %v214
    %v219 = vld [vmem:[%s4] sm:$0xf]
    %v220 = vld [vmem:[%s4 + $0x4] sm:$0xf]
    %v221 = vld [vmem:[%s4 + $0x8] sm:$0xf]
    %v222 = vld [vmem:[%s4 + $0xc] sm:$0xf]
    %v223 = vld [vmem:[%s4 + $0x10] sm:$0xf]
    %v224 = vld [vmem:[%s4 + $0x14] sm:$0xf]
    %v225 = vld [vmem:[%s4 + $0x18] sm:$0xf]
    %v226 = vld [vmem:[%s4 + $0x1c] sm:$0xf]
    %v227 = vld [vmem:[%s5] sm:$0x1]
    %v229 = vlaneseq
    %v230 = vshrl.u32 %v229, 7
    %v231 = vsub.s32 0, %v230
    %v232 = vrot.slane %v227, %v231
    %v242 = vunpack.c.l.b16 %v219
    %v243 = vunpack.c.l.b16 %v220
    %v244 = vunpack.c.l.b16 %v221
    %v245 = vunpack.c.l.b16 %v222
    %v246 = vunpack.c.l.b16 %v223
    %v247 = vunpack.c.l.b16 %v224
    %v248 = vunpack.c.l.b16 %v225
    %v249 = vunpack.c.l.b16 %v226
    %v250 = vpack.c.b16 %v243, %v242
    %v251 = vpack.c.b16 %v245, %v244
    %v252 = vpack.c.b16 %v247, %v246
    %v253 = vpack.c.b16 %v249, %v248
    %vm258 = vcmask 523264
    %v259 = vsel %vm258, %v218, 0
    %261 = vmatprep.subr.bf16.mxu0 0
    %262 = vmatpush1.bf16.msra.mxu0 %v250
    %263 = vmatprep.subr.bf16.mxu0 0
    %264 = vmatpush1.bf16.msra.mxu0 %v251
    %265 = vmatprep.subr.bf16.mxu0 0
    %266 = vmatpush1.bf16.msra.mxu0 %v252
    %267 = vmatprep.subr.bf16.mxu0 0
    %268 = vmatpush1.bf16.msra.mxu0 %v253
    %269 = vmatprep.subr.bf16.mxu0 0
    %270 = vmatpush1.bf16.msra.mxu0 0
    %271 = vmatprep.subr.bf16.mxu0 0
    %272 = vmatpush1.bf16.msra.mxu0 0
    %273 = vmatprep.subr.bf16.mxu0 0
    %274 = vmatpush1.bf16.msra.mxu0 0
    %275 = vmatprep.subr.bf16.mxu0 0
    %276 = vmatpush1.bf16.msra.mxu0 0
    %277 = vmatprep.subr.bf16.mxu0 0
    %278 = vmatpush1.bf16.msra.mxu0 0
    %279 = vmatprep.subr.bf16.mxu0 0
    %280 = vmatpush1.bf16.msra.mxu0 0
    %281 = vmatprep.subr.bf16.mxu0 0
    %282 = vmatpush1.bf16.msra.mxu0 0
    %283 = vmatprep.subr.bf16.mxu0 0
    %284 = vmatpush1.bf16.msra.mxu0 0
    %285 = vmatprep.subr.bf16.mxu0 0
    %286 = vmatpush1.bf16.msra.mxu0 0
    %287 = vmatprep.subr.bf16.mxu0 0
    %288 = vmatpush1.bf16.msra.mxu0 0
    %289 = vmatprep.subr.bf16.mxu0 0
    %290 = vmatpush1.bf16.msra.mxu0 0
    %291 = vmatprep.subr.bf16.mxu0 0
    %292 = vmatpush1.bf16.msra.mxu0 0
    %293 = vmatprep.mubr.bf16.mxu0 0
    %294 = vmatmul.mubr.bf16.gmra.mrb[0].mxu0 %v259
    %v295 = vpop.f32.mrb[0].mxu0
    %v296 = vadd.f32 %v232, %v295
    %v297 = vpop.f32.mrb[0].mxu0
    %v298 = vpop.f32.mrb[0].mxu0
    %v299 = vadd.f32 %v232, %v298
    %v300 = vpop.f32.mrb[0].mxu0
    %301 = vdwg.mxu0
    %302 = vst.msk [vmem:[#allocation2] sm:$0xff] %vm215, %v296
    %303 = vst.msk [vmem:[#allocation2 + $0x8] sm:$0xff] %vm215, %v299
    // Predicated region
    $region26: #{tpu_custom_call.1} parent=1 // pred_check
      _
    $region27: #{tpu_custom_call.1} parent=1 // pred_check_branch
      %305 = sbr.rel (0) target = $region29
    $region28: #{tpu_custom_call.1} parent=1 // pred_region
      %s307 = ssub.s32 256, 256
      %308 = vsyncadd [#allocation3], %s307
      %s309 = sshll.u32 [#allocation2], 4
      %s310 = int_to_ptr.vmem [resolvable:$true] %s309
      %315 = dma.vmem_to_hbm [thread:$0]  %s310, 256, %s6, [#allocation3], 128, 128, 8
    $region29: #{tpu_custom_call.1} parent=1 // pred_fallthru
      _
    // Predicated region
    $region30: #{tpu_custom_call.1} parent=1 // pred_check
      _
    $region31: #{tpu_custom_call.1} parent=1 // pred_check_branch
      %317 = sbr.rel (0) target = $region33
    $region32: #{tpu_custom_call.1} parent=1 // pred_region
      %318 = dma.done [#allocation3], 256
    $region33: #{tpu_custom_call.1} parent=1 // pred_fallthru
      _
    %319 = vsyncpa [#allocation3], 1

</llo_original>
